<compile_context>
chip_gen: v6e
topology: v6e:2x2x1
jax: 0.10.0
libtpu: 0.0.40
codegen_flags: <defaults>
</compile_context>

<pallas_src>
import functools

import jax
import jax.numpy as jnp
from jax.experimental import pallas as pl
from jax.experimental.pallas import tpu as pltpu


def _round_up(v, m):
    return ((v + m - 1) // m) * m


def _mse_partial_kernel(x_ref, o_ref, *, n, d, total_b, tb, need_mask):
    # x_ref: (tb, n*d) lane-dense block (input dtype); o_ref: (1, 8, 128) f32 tile.
    # out_positive = row n==0  -> lane slice [0, d)
    pos = x_ref[:, 0:d].astype(jnp.float32)                       # (tb, d)
    # sum over anchor rows n = 1 .. N-1 via static D-wide lane slices
    anchor = x_ref[:, d:2 * d].astype(jnp.float32)                # (tb, d)
    for j in range(2, n):
        anchor = anchor + x_ref[:, j * d:(j + 1) * d].astype(jnp.float32)
    diff = pos - anchor * (1.0 / float(n - 1))                    # pos - mean(anchor)
    sq = diff * diff                                              # (tb, d)

    if need_mask:
        # Last grid tile may extend past B; zero contributions from padded rows.
        # (select does not propagate garbage/NaN from the unselected branch.)
        row = (pl.program_id(0) * tb
               + jax.lax.broadcasted_iota(jnp.int32, sq.shape, 0))
        sq = jnp.where(row < total_b, sq, 0.0)

    # Scalar f32 partial sum for this tile, stored as a full (8,128) tile.
    o_ref[...] = jnp.full(o_ref.shape, jnp.sum(sq), dtype=jnp.float32)


def mse_loss_pallas(x, *, block_b=None, target_block_bytes=8 * 1024 * 1024):
    """x: (B, N, D), N >= 2, float dtype. Returns (nloss scalar f32, prec1 int32 0)."""
    assert x.ndim == 3 and x.shape[1] >= 2
    B, N, D = x.shape
    L = N * D
    itemsize = jnp.dtype(x.dtype).itemsize
    sub_mult = {4: 8, 2: 16, 1: 32}.get(itemsize, 8)   # sublane packing multiple

    # Padded VMEM footprint per row of the lane-dense (B, N*D) view.
    L_pad = _round_up(L, 128)
    bytes_per_row = L_pad * itemsize

    if block_b is None:
        if B <= sub_mult:
            block_b = B                                 # single full-batch tile
        else:
            rows_by_bytes = max(
                sub_mult,
                (target_block_bytes // bytes_per_row) // sub_mult * sub_mult)
            # Ensure >= 2 grid tiles so v7x can shard across both TensorCores.
            half = _round_up(pl.cdiv(B, 2), sub_mult)
            block_b = min(rows_by_bytes, half)
            if block_b >= B:
                block_b = B
    else:
        block_b = int(block_b)
        if block_b >= B:
            block_b = B
        else:
            block_b = min(B, max(sub_mult, _round_up(block_b, sub_mult)))

    num_tiles = pl.cdiv(B, block_b)
    need_mask = (B % block_b) != 0

    block_b_pad = _round_up(block_b, sub_mult)
    in_block_bytes = block_b_pad * bytes_per_row
    # Double buffer + output/temps + headroom; keep <= 48 MiB for v7x (64 MiB phys).
    vmem_limit = int(min(48 * 1024 * 1024,
                         max(16 * 1024 * 1024,
                             2 * in_block_bytes + 8 * 1024 * 1024)))
    # TODO(synk): if a single padded row (N*D) is so large that even `sub_mult`
    # rows exceed the v7x VMEM budget, add a second "arbitrary" grid axis over N
    # with a VMEM scratch accumulator instead of a full-(N*D) block per step.

    x_flat = x.reshape(B, L)   # zero-copy: lane-dense, contiguous HBM layout

    kernel = functools.partial(_mse_partial_kernel, n=N, d=D,
                               total_b=B, tb=block_b, need_mask=need_mask)

    # Deepen the input pipeline only if blocks are forced small with many tiles.
    if in_block_bytes < 2 * 1024 * 1024 and num_tiles > 2:
        in_spec = pl.BlockSpec((block_b, L), lambda i: (i, 0),
                               pipeline_mode=pl.Buffered(3))
    else:
        in_spec = pl.BlockSpec((block_b, L), lambda i: (i, 0))

    partials = pl.pallas_call(
        kernel,
        out_shape=jax.ShapeDtypeStruct((num_tiles, 8, 128), jnp.float32),
        grid_spec=pltpu.PrefetchScalarGridSpec(
            num_scalar_prefetch=0,
            grid=(num_tiles,),
            in_specs=[in_spec],
            out_specs=pl.BlockSpec((1, 8, 128), lambda i: (i, 0, 0)),
        ),
        compiler_params=pltpu.CompilerParams(
            dimension_semantics=("parallel",),   # shard tiles across TCs on v7x
            vmem_limit_bytes=vmem_limit,
        ),
        cost_estimate=pl.CostEstimate(
            flops=int(3 * B * N * D),
            transcendentals=0,
            bytes_accessed=int(B * L * itemsize + num_tiles * 8 * 128 * 4),
        ),
    )(x_flat)

    # Finalize once: sum per-tile partials and apply the single 1/(B*D) scale.
    nloss = jnp.sum(partials[:, 0, 0]) * (1.0 / float(B * D))
    prec1 = jnp.array(0, dtype=jnp.int32)
    return nloss, prec1


if __name__ == "__main__":
    key = jax.random.PRNGKey(0)
    B, N, D = 2, 8, 32  # batch=2, 8 utterances per speaker, embedding dim 32
    x = jax.random.normal(key, (B, N, D), dtype=jnp.float32)

    nloss, prec1 = mse_loss_pallas(x)
    jax.block_until_ready(nloss)

    ref = jnp.mean((x[:, 0, :] - jnp.mean(x[:, 1:, :], axis=1)) ** 2)
    assert jnp.allclose(nloss, ref, rtol=1e-5, atol=1e-6), (float(nloss), float(ref))
    assert int(prec1) == 0

    # Extra check: batch large enough for a 2-tile grid with a ragged last tile
    # (exercises the OOB-row mask and the megacore tile split).
    x2 = jax.random.normal(jax.random.PRNGKey(1), (11, 4, 32), dtype=jnp.float32)
    nloss2, _ = mse_loss_pallas(x2)
    jax.block_until_ready(nloss2)
    ref2 = jnp.mean((x2[:, 0, :] - jnp.mean(x2[:, 1:, :], axis=1)) ** 2)
    assert jnp.allclose(nloss2, ref2, rtol=1e-5, atol=1e-6), (float(nloss2), float(ref2))

    print("KERNEL_OK")
</pallas_src>

<mosaic_0001>
module attributes {stable_mosaic.version = 11 : i64} {
  func.func @_mse_partial_kernel(%arg0: i32, %arg1: memref<2x256xf32, #tpu.memory_space<vmem>>, %arg2: memref<1x8x128xf32, #tpu.memory_space<vmem>>) attributes {dimension_semantics = [#tpu.dimension_semantics<parallel>], iteration_bounds = array<i64: 1>, scalar_prefetch = 0 : i64, scratch_operands = 0 : i64, tpu.core_type = #tpu.core_type<tc>, window_params = [{transform_indices = @transform_0, window_bounds = array<i64: 2, 256>}, {transform_indices = @transform_1, window_bounds = array<i64: 1, 8, 128>}]} {
    %c0 = arith.constant 0 : index
    %c0_0 = arith.constant 0 : index
    %0 = vector.load %arg1[%c0, %c0_0] : memref<2x256xf32, #tpu.memory_space<vmem>>, vector<2x32xf32>
    %c0_1 = arith.constant 0 : index
    %c32 = arith.constant 32 : index
    %1 = vector.load %arg1[%c0_1, %c32] : memref<2x256xf32, #tpu.memory_space<vmem>>, vector<2x32xf32>
    %c0_2 = arith.constant 0 : index
    %c64 = arith.constant 64 : index
    %2 = vector.load %arg1[%c0_2, %c64] : memref<2x256xf32, #tpu.memory_space<vmem>>, vector<2x32xf32>
    %3 = arith.addf %1, %2 : vector<2x32xf32>
    %c0_3 = arith.constant 0 : index
    %c96 = arith.constant 96 : index
    %4 = vector.load %arg1[%c0_3, %c96] : memref<2x256xf32, #tpu.memory_space<vmem>>, vector<2x32xf32>
    %5 = arith.addf %3, %4 : vector<2x32xf32>
    %c0_4 = arith.constant 0 : index
    %c128 = arith.constant 128 : index
    %6 = vector.load %arg1[%c0_4, %c128] : memref<2x256xf32, #tpu.memory_space<vmem>>, vector<2x32xf32>
    %7 = arith.addf %5, %6 : vector<2x32xf32>
    %c0_5 = arith.constant 0 : index
    %c160 = arith.constant 160 : index
    %8 = vector.load %arg1[%c0_5, %c160] : memref<2x256xf32, #tpu.memory_space<vmem>>, vector<2x32xf32>
    %9 = arith.addf %7, %8 : vector<2x32xf32>
    %c0_6 = arith.constant 0 : index
    %c192 = arith.constant 192 : index
    %10 = vector.load %arg1[%c0_6, %c192] : memref<2x256xf32, #tpu.memory_space<vmem>>, vector<2x32xf32>
    %11 = arith.addf %9, %10 : vector<2x32xf32>
    %c0_7 = arith.constant 0 : index
    %c224 = arith.constant 224 : index
    %12 = vector.load %arg1[%c0_7, %c224] : memref<2x256xf32, #tpu.memory_space<vmem>>, vector<2x32xf32>
    %13 = arith.addf %11, %12 : vector<2x32xf32>
    %cst = arith.constant 0.142857149 : f32
    %14 = vector.broadcast %cst : f32 to vector<2x32xf32>
    %15 = arith.mulf %13, %14 : vector<2x32xf32>
    %16 = arith.subf %0, %15 : vector<2x32xf32>
    %17 = arith.mulf %16, %16 : vector<2x32xf32>
    %18 = vector.shape_cast %17 : vector<2x32xf32> to vector<1x2x32xf32>
    %cst_8 = arith.constant dense<0.000000e+00> : vector<1xf32>
    %19 = vector.multi_reduction <add>, %18, %cst_8 [1, 2] : vector<1x2x32xf32> to vector<1xf32>
    %20 = vector.shape_cast %19 : vector<1xf32> to vector<1x1x1xf32>
    %21 = vector.extract %20[0, 0, 0] : f32 from vector<1x1x1xf32>
    %22 = vector.broadcast %21 : f32 to vector<1x8x128xf32>
    %c0_9 = arith.constant 0 : index
    %c0_10 = arith.constant 0 : index
    %c0_11 = arith.constant 0 : index
    %23 = vector.load %arg2[%c0_9, %c0_10, %c0_11] : memref<1x8x128xf32, #tpu.memory_space<vmem>>, vector<1x8x128xf32>
    tpu.vector_store %arg2[%c0_9, %c0_10, %c0_11], %22 {strides = array<i32>} : memref<1x8x128xf32, #tpu.memory_space<vmem>>, vector<1x8x128xf32>,
    return
  }
  func.func @transform_0(%arg0: i32) -> (i32, i32) {
    %c0_i32 = arith.constant 0 : i32
    %c0_i32_0 = arith.constant 0 : i32
    return %arg0, %c0_i32 : i32, i32
  }
  func.func @transform_1(%arg0: i32) -> (i32, i32, i32) {
    %c0_i32 = arith.constant 0 : i32
    %c0_i32_0 = arith.constant 0 : i32
    %c0_i32_1 = arith.constant 0 : i32
    return %arg0, %c0_i32, %c0_i32_0 : i32, i32, i32
  }
}

</mosaic_0001>

<llo_original>
// kernel: tpu_custom_call.1
$region0: #{tpu_custom_call.1}
  #allocation0 [shape = 'u32[]', space=smem, size = 0x4, offset = 0x4, fixed_abs, tag = 'smem constant byte address 0x4 - core index']
  #allocation1 [shape = 'u32[144,128]{1,0:T(1,128)}', space=vmem, size = 0x12000, scoped, tag = 'internal scratch']
  %s0 = inlined_call_operand.hbm [shape: f32[2,256], index: 0, kind: input, shape index: {}]
  %s1 = inlined_call_operand.hbm [shape: f32[1,8,128], index: 1, kind: output, shape index: {}]
  %s2 = sld [smem:[#allocation0]]
  $region18: #{tpu_custom_call.1} parent=0
    _
  %s4 = ssub.s32 1, %s2
  %s5 = scalar_select 0, %s4, %s2
  $region1: #{tpu_custom_call.1} parent=0
    #allocation2 [shape = 'u8[2048]{0}', space=vmem, size = 0x800, scoped, tag = 'input window, operand 0, single buffered']
    #allocation3 [shape = 's32[1]{0}', space=sflag, size = 0x4, scoped, tag = 'scoped memory for tpu_custom_call.1']
    #allocation4 [shape = 's32[1]{0}', space=sflag, size = 0x4, scoped, tag = 'scoped memory for tpu_custom_call.1']
    #allocation5 [shape = 'u8[4096]{0}', space=vmem, size = 0x1000, scoped, tag = 'output window, operand 0, single buffered']
    %6 = vsyncpa [#allocation3], 0
    %7 = vsyncpa [#allocation4], 0
    // Predicated region
    $region2: #{tpu_custom_call.1} parent=1 // pred_check
      _
    $region3: #{tpu_custom_call.1} parent=1 // pred_check_branch
      %9 = sbr.rel (0) target = $region5
    $region4: #{tpu_custom_call.1} parent=1 // pred_region
      %s11 = ssub.s32 64, 64
      %12 = vsyncadd [#allocation3], %s11
      %s14 = sshll.u32 [#allocation2], 4
      %s15 = int_to_ptr.vmem [resolvable:$true] %s14
      %17 = dma.hbm_to_vmem [thread:$0]  %s0, 64, %s15, [#allocation3]
    $region5: #{tpu_custom_call.1} parent=1 // pred_fallthru
      _
    // Predicated region
    $region6: #{tpu_custom_call.1} parent=1 // pred_check
      _
    $region7: #{tpu_custom_call.1} parent=1 // pred_check_branch
      %19 = sbr.rel (0) target = $region9
    $region8: #{tpu_custom_call.1} parent=1 // pred_region
      %20 = dma.done [#allocation3], 64
    $region9: #{tpu_custom_call.1} parent=1 // pred_fallthru
      _
    %v21 = vld [vmem:[#allocation2] sm:$0x3]
    %23 = vrot.lane.b32.xlu0 %v21, 96
    %v24 = vpop.permute.xlu0 %23
    %v26 = vadd.f32 %v21, %v24
    %27 = vrot.lane.b32.xlu0 %v21, 64
    %v28 = vpop.permute.xlu0 %27
    %v30 = vadd.f32 %v26, %v28
    %v31 = vld [vmem:[#allocation2 + $0x2] sm:$0x3]
    %33 = vrot.lane.b32.xlu0 %v31, 32
    %v34 = vpop.permute.xlu0 %33
    %v36 = vadd.f32 %v30, %v34
    %v37 = vadd.f32 %v36, %v31
    %38 = vrot.lane.b32.xlu0 %v31, 96
    %v39 = vpop.permute.xlu0 %38
    %v41 = vadd.f32 %v37, %v39
    %42 = vrot.lane.b32.xlu0 %v31, 64
    %v43 = vpop.permute.xlu0 %42
    %v45 = vadd.f32 %v41, %v43
    %v46 = vmul.f32 %v45, 0.14285715
    %48 = vrot.lane.b32.xlu0 %v46, 96
    %v49 = vpop.permute.xlu0 %48
    %v51 = vsub.f32 %v21, %v49
    %v52 = vmul.f32 %v51, %v51
    %vm53 = vcmask 254976
    %v54 = vsel %vm53, %v52, 0.0
    %55 = vadd.xlane.f32.xlu0 %v54
    %v56 = vpop.xlane.xlu0 %55
    %v57 = vrot.slane %v56, 4
    %v58 = vadd.f32 %v56, %v57
    %v59 = vrot.slane %v58, 2
    %v60 = vadd.f32 %v58, %v59
    %v61 = vrot.slane %v60, 1
    %v62 = vadd.f32 %v60, %v61
    %s63 = vtos %v62
    %v64 = vstv %s63
    %65 = vst [vmem:[#allocation5] sm:$0xff] %v64
    // Predicated region
    $region10: #{tpu_custom_call.1} parent=1 // pred_check
      _
    $region11: #{tpu_custom_call.1} parent=1 // pred_check_branch
      %67 = sbr.rel (0) target = $region13
    $region12: #{tpu_custom_call.1} parent=1 // pred_region
      %s69 = ssub.s32 128, 128
      %70 = vsyncadd [#allocation4], %s69
      %s72 = sshll.u32 [#allocation5], 4
      %s73 = int_to_ptr.vmem [resolvable:$true] %s72
      %75 = dma.vmem_to_hbm [thread:$0]  %s73, 128, %s1, [#allocation4]
    $region13: #{tpu_custom_call.1} parent=1 // pred_fallthru
      _
    // Predicated region
    $region14: #{tpu_custom_call.1} parent=1 // pred_check
      _
    $region15: #{tpu_custom_call.1} parent=1 // pred_check_branch
      %77 = sbr.rel (0) target = $region17
    $region16: #{tpu_custom_call.1} parent=1 // pred_region
      %78 = dma.done [#allocation4], 128
    $region17: #{tpu_custom_call.1} parent=1 // pred_fallthru
      _
    %79 = vsyncpa [#allocation3], 1
    %80 = vsyncpa [#allocation4], 1

</llo_original>
